<compile_context>
chip_gen: v5e
topology: v5e:2x2
jax: 0.10.0
libtpu: 0.0.40
codegen_flags: <defaults>
</compile_context>

<pallas_src>
import jax
import jax.numpy as jnp
from jax.experimental import pallas as pl
from jax.experimental.pallas import tpu as pltpu


def _round_up(n, m):
    return ((n + m - 1) // m) * m


def classify_kernel(xc_ref, cw_ref, cb_ref, fwt_ref, fb_ref, out_ref):
    # xc_ref : (TB, L, KC)   im2col input tile (channels-last, K*C_in columns)
    # cw_ref : (KC, Hp)      conv weight, tap-major flattened, hidden-padded to Hp
    # cb_ref : (1, Hp)       conv bias (zero in padded hidden lanes)
    # fwt_ref: (Hp, NCp)     fc weight, pre-scaled by 1/L, padded to (Hp, NCp)
    # fb_ref : (1, NCp)      fc bias (zero in padded class lanes)
    # out_ref: (TB, NCp)     lane-dense logits slab for this batch tile
    TB, L, KC = xc_ref.shape
    Hp = cw_ref.shape[1]

    # Conv1d (same padding) as one im2col matmul on the MXU: M = TB*L, K = KC, N = Hp.
    x2 = xc_ref[...].reshape(TB * L, KC)
    h = jnp.dot(x2, cw_ref[...], preferred_element_type=jnp.float32)     # (TB*L, Hp)
    h = jnp.maximum(h + cb_ref[...], 0.0)                                # bias + ReLU (VPU)

    # Global average pool over length: sum here, 1/L folded into fwt (wrapper).
    pooled = jnp.sum(h.reshape(TB, L, Hp), axis=1)                       # (TB, Hp)

    # FC once per batch tile: M = TB, K = Hp, N = NCp.
    logits = jnp.dot(pooled, fwt_ref[...], preferred_element_type=jnp.float32) + fb_ref[...]
    out_ref[...] = logits.astype(out_ref.dtype)                          # (TB, NCp) dense store


def shot_energy_normalization_forward(x, conv_w, conv_b, fc_w, fc_b, *, batch_tile=None):
    """Equivalent of ShotEnergyNormalization.forward: eval-mode classify(x).

    x      : (B, C_in, L)  float (PyTorch NCW layout)
    conv_w : (H, C_in, K)  PyTorch Conv1d weight layout
    conv_b : (H,)
    fc_w   : (NC, H)       PyTorch Linear weight layout
    fc_b   : (NC,)
    returns logits (B, NC) float32
    """
    x = x.astype(jnp.float32)                 # mirrors x.float() in classify()
    B, C_in, L = x.shape
    H, _, K = conv_w.shape
    NC = fc_w.shape[0]
    assert K % 2 == 1, "same-padding arithmetic (pad=K//2) requires an odd kernel size"
    pad = K // 2
    KC = K * C_in

    # ---- padded / lane-dense dimensions --------------------------------------
    Hp = _round_up(H, 128)                    # hidden dim -> full 128-lane vregs
    NCp = _round_up(NC, 128)                  # logits dim -> unmasked lane-dense stores

    # batch tile: amortize per-grid-step overhead; keep it (a) a divisor-friendly
    # multiple of 8 when B is large, (b) == B when B is small.
    if batch_tile is None:
        batch_tile = B if B <= 64 else 64
    TB = batch_tile
    Bp = _round_up(B, TB)

    # ---- glue: layout plumbing in plain JAX ----------------------------------
    # im2col: (B, L, K*C_in) with columns ordered [tap0 chans | tap1 chans | ...]
    x_nlc = jnp.transpose(x, (0, 2, 1))                               # (B, L, C_in)
    x_p = jnp.pad(x_nlc, ((0, 0), (pad, pad), (0, 0)))                # (B, L+K-1, C_in)
    cols = jnp.concatenate([x_p[:, k:k + L, :] for k in range(K)], axis=-1)   # (B, L, KC)
    if Bp > B:
        cols = jnp.pad(cols, ((0, Bp - B), (0, 0), (0, 0)))           # pad batch to tile multiple

    # conv weight -> (K, C_in, H) -> (KC, H), lane-padded to (KC, Hp)
    cw = jnp.transpose(conv_w, (2, 1, 0)).reshape(KC, H).astype(jnp.float32)
    cw = jnp.pad(cw, ((0, 0), (0, Hp - H)))
    cb = jnp.pad(conv_b.astype(jnp.float32).reshape(1, H), ((0, 0), (0, Hp - H)))

    # fc weight -> (H, NC), fold the 1/L of the mean pool, pad to (Hp, NCp)
    fwt = (fc_w.T.astype(jnp.float32) / jnp.float32(L))
    fwt = jnp.pad(fwt, ((0, Hp - H), (0, NCp - NC)))
    fb = jnp.pad(fc_b.astype(jnp.float32).reshape(1, NC), ((0, 0), (0, NCp - NC)))

    grid = (Bp // TB,)
    out = pl.pallas_call(
        classify_kernel,
        out_shape=jax.ShapeDtypeStruct((Bp, NCp), jnp.float32),
        grid=grid,
        in_specs=[
            pl.BlockSpec((TB, L, KC), lambda i: (i, 0, 0)),   # batch-tiled input columns
            pl.BlockSpec((KC, Hp), lambda i: (0, 0)),         # weights resident across grid
            pl.BlockSpec((1, Hp), lambda i: (0, 0)),
            pl.BlockSpec((Hp, NCp), lambda i: (0, 0)),
            pl.BlockSpec((1, NCp), lambda i: (0, 0)),
        ],
        out_specs=pl.BlockSpec((TB, NCp), lambda i: (i, 0)),
        compiler_params=pltpu.CompilerParams(dimension_semantics=("parallel",)),
    )(cols, cw, cb, fwt, fb)

    return out[:B, :NC]


def _reference_forward(x, conv_w, conv_b, fc_w, fc_b):
    """Plain-JAX reference (Conv1d same-pad + ReLU + mean-pool + Linear)."""
    x = x.astype(jnp.float32)
    B, C_in, L = x.shape
    H, _, K = conv_w.shape
    pad = K // 2
    xp = jnp.pad(x, ((0, 0), (0, 0), (pad, pad)))             # (B, C_in, L+K-1)
    y = jnp.zeros((B, H, L), jnp.float32)
    for k in range(K):
        # y[b,h,l] += sum_c w[h,c,k] * xp[b,c,l+k]
        y = y + jnp.einsum("hc,bcl->bhl", conv_w[:, :, k], xp[:, :, k:k + L])
    y = jnp.maximum(y + conv_b[None, :, None], 0.0)
    pooled = y.mean(axis=-1)                                   # (B, H)
    return pooled @ fc_w.T + fc_b[None, :]


if __name__ == "__main__":
    # small shapes consistent with the module's 1-D data convention (n_ch=3, n_classes=7)
    B, C_IN, L = 2, 3, 32      # batch, n_ch, im_sz
    H, NC, K = 32, 7, 3        # hidden channels, n_classes, conv kernel size

    key = jax.random.PRNGKey(0)
    kx, kcw, kcb, kfw, kfb = jax.random.split(key, 5)
    x = jax.random.uniform(kx, (B, C_IN, L), jnp.float32, -1.0, 1.0)
    conv_w = 0.1 * jax.random.normal(kcw, (H, C_IN, K), jnp.float32)
    conv_b = 0.1 * jax.random.normal(kcb, (H,), jnp.float32)
    fc_w = 0.1 * jax.random.normal(kfw, (NC, H), jnp.float32)
    fc_b = 0.1 * jax.random.normal(kfb, (NC,), jnp.float32)

    out = shot_energy_normalization_forward(x, conv_w, conv_b, fc_w, fc_b)
    out = jax.block_until_ready(out)

    ref = _reference_forward(x, conv_w, conv_b, fc_w, fc_b)
    assert out.shape == (B, NC)
    assert jnp.allclose(out, ref, atol=1e-4, rtol=1e-4), "Pallas output mismatch vs reference"

    # TODO(synk): adapt()/forward_and_adapt (SGLD sampling, entropy/energy losses, optimizer
    # updates) are training-time adaptation with autograd/optimizer state, not part of
    # forward(); not implemented as a kernel.
    print("KERNEL_OK")
</pallas_src>

<mosaic_0001>
module attributes {stable_mosaic.version = 11 : i64} {
  func.func @classify_kernel(%arg0: i32, %arg1: memref<2x32x9xf32, #tpu.memory_space<vmem>>, %arg2: memref<9x128xf32, #tpu.memory_space<vmem>>, %arg3: memref<1x128xf32, #tpu.memory_space<vmem>>, %arg4: memref<128x128xf32, #tpu.memory_space<vmem>>, %arg5: memref<1x128xf32, #tpu.memory_space<vmem>>, %arg6: memref<2x128xf32, #tpu.memory_space<vmem>>) attributes {dimension_semantics = [#tpu.dimension_semantics<parallel>], iteration_bounds = array<i64: 1>, scalar_prefetch = 0 : i64, scratch_operands = 0 : i64, tpu.core_type = #tpu.core_type<tc>, window_params = [{transform_indices = @transform_0, window_bounds = array<i64: 2, 32, 9>}, {pipeline_mode = #tpu.pipeline_mode<synchronous>, transform_indices = @transform_1, window_bounds = array<i64: 9, 128>}, {pipeline_mode = #tpu.pipeline_mode<synchronous>, transform_indices = @transform_2, window_bounds = array<i64: 1, 128>}, {pipeline_mode = #tpu.pipeline_mode<synchronous>, transform_indices = @transform_3, window_bounds = array<i64: 128, 128>}, {pipeline_mode = #tpu.pipeline_mode<synchronous>, transform_indices = @transform_4, window_bounds = array<i64: 1, 128>}, {transform_indices = @transform_5, window_bounds = array<i64: 2, 128>}]} {
    %c0 = arith.constant 0 : index
    %c0_0 = arith.constant 0 : index
    %c0_1 = arith.constant 0 : index
    %0 = vector.load %arg1[%c0, %c0_0, %c0_1] : memref<2x32x9xf32, #tpu.memory_space<vmem>>, vector<2x32x9xf32>
    %1 = vector.shape_cast %0 : vector<2x32x9xf32> to vector<64x9xf32>
    %c0_2 = arith.constant 0 : index
    %c0_3 = arith.constant 0 : index
    %2 = vector.load %arg2[%c0_2, %c0_3] : memref<9x128xf32, #tpu.memory_space<vmem>>, vector<9x128xf32>
    %cst = arith.constant dense<0.000000e+00> : vector<64x128xf32>
    %3 = tpu.matmul %1, %2, %cst {dimension_numbers = #tpu.dot_dimension_numbers<[1], [0], [0], [1], [0, 0, 1, 1], [], []>} : vector<64x9xf32>, vector<9x128xf32>, vector<64x128xf32> -> vector<64x128xf32>
    %c0_4 = arith.constant 0 : index
    %c0_5 = arith.constant 0 : index
    %4 = vector.load %arg3[%c0_4, %c0_5] : memref<1x128xf32, #tpu.memory_space<vmem>>, vector<1x128xf32>
    %5 = vector.broadcast %4 : vector<1x128xf32> to vector<64x128xf32>
    %6 = arith.addf %3, %5 : vector<64x128xf32>
    %cst_6 = arith.constant 0.000000e+00 : f32
    %7 = vector.broadcast %cst_6 : f32 to vector<64x128xf32>
    %8 = arith.maximumf %6, %7 : vector<64x128xf32>
    %9 = vector.shape_cast %8 : vector<64x128xf32> to vector<2x32x128xf32>
    %cst_7 = arith.constant dense<0.000000e+00> : vector<2x128xf32>
    %10 = vector.multi_reduction <add>, %9, %cst_7 [1] : vector<2x32x128xf32> to vector<2x128xf32>
    %c0_8 = arith.constant 0 : index
    %c0_9 = arith.constant 0 : index
    %11 = vector.load %arg4[%c0_8, %c0_9] : memref<128x128xf32, #tpu.memory_space<vmem>>, vector<128x128xf32>
    %cst_10 = arith.constant dense<0.000000e+00> : vector<2x128xf32>
    %12 = tpu.matmul %10, %11, %cst_10 {dimension_numbers = #tpu.dot_dimension_numbers<[1], [0], [0], [1], [0, 0, 1, 1], [], []>} : vector<2x128xf32>, vector<128x128xf32>, vector<2x128xf32> -> vector<2x128xf32>
    %c0_11 = arith.constant 0 : index
    %c0_12 = arith.constant 0 : index
    %13 = vector.load %arg5[%c0_11, %c0_12] : memref<1x128xf32, #tpu.memory_space<vmem>>, vector<1x128xf32>
    %14 = vector.broadcast %13 : vector<1x128xf32> to vector<2x128xf32>
    %15 = arith.addf %12, %14 : vector<2x128xf32>
    %c0_13 = arith.constant 0 : index
    %c0_14 = arith.constant 0 : index
    %16 = vector.load %arg6[%c0_13, %c0_14] : memref<2x128xf32, #tpu.memory_space<vmem>>, vector<2x128xf32>
    tpu.vector_store %arg6[%c0_13, %c0_14], %15 {strides = array<i32>} : memref<2x128xf32, #tpu.memory_space<vmem>>, vector<2x128xf32>,
    return
  }
  func.func @transform_0(%arg0: i32) -> (i32, i32, i32) {
    %c0_i32 = arith.constant 0 : i32
    %c0_i32_0 = arith.constant 0 : i32
    %c0_i32_1 = arith.constant 0 : i32
    return %arg0, %c0_i32, %c0_i32_0 : i32, i32, i32
  }
  func.func @transform_1(%arg0: i32) -> (i32, i32) {
    %c0_i32 = arith.constant 0 : i32
    %c0_i32_0 = arith.constant 0 : i32
    %c0_i32_1 = arith.constant 0 : i32
    return %c0_i32, %c0_i32_0 : i32, i32
  }
  func.func @transform_2(%arg0: i32) -> (i32, i32) {
    %c0_i32 = arith.constant 0 : i32
    %c0_i32_0 = arith.constant 0 : i32
    %c0_i32_1 = arith.constant 0 : i32
    return %c0_i32, %c0_i32_0 : i32, i32
  }
  func.func @transform_3(%arg0: i32) -> (i32, i32) {
    %c0_i32 = arith.constant 0 : i32
    %c0_i32_0 = arith.constant 0 : i32
    %c0_i32_1 = arith.constant 0 : i32
    return %c0_i32, %c0_i32_0 : i32, i32
  }
  func.func @transform_4(%arg0: i32) -> (i32, i32) {
    %c0_i32 = arith.constant 0 : i32
    %c0_i32_0 = arith.constant 0 : i32
    %c0_i32_1 = arith.constant 0 : i32
    return %c0_i32, %c0_i32_0 : i32, i32
  }
  func.func @transform_5(%arg0: i32) -> (i32, i32) {
    %c0_i32 = arith.constant 0 : i32
    %c0_i32_0 = arith.constant 0 : i32
    return %arg0, %c0_i32 : i32, i32
  }
}

</mosaic_0001>

<llo_original>
// kernel: tpu_custom_call.1
$region0: #{tpu_custom_call.1}
  #allocation0 [shape = 'u32[]', space=smem, size = 0x4, offset = 0x4, fixed_abs, tag = 'smem constant byte address 0x4 - core index']
  #allocation1 [shape = 'u32[72,128]{1,0:T(1,128)}', space=vmem, size = 0x9000, scoped, tag = 'internal scratch']
  %s0 = inlined_call_operand.vmem [shape: f32[2,32,9], index: 0, kind: input, shape index: {}]
  %s1 = inlined_call_operand.vmem [shape: f32[9,128], index: 1, kind: input, shape index: {}]
  %s2 = inlined_call_operand.vmem [shape: f32[1,128], index: 2, kind: input, shape index: {}]
  %s3 = inlined_call_operand.hbm [shape: f32[128,128], index: 3, kind: input, shape index: {}]
  %s4 = inlined_call_operand.vmem [shape: f32[1,128], index: 4, kind: input, shape index: {}]
  %s5 = inlined_call_operand.hbm [shape: f32[2,128], index: 5, kind: output, shape index: {}]
  %s6 = sld [smem:[#allocation0]]
  $region34: #{tpu_custom_call.1} parent=0
    _
  %s8 = ssub.s32 1, %s6
  %s9 = scalar_select 0, %s8, %s6
  $region1: #{tpu_custom_call.1} parent=0
    #allocation2 [shape = 'u8[65536]{0}', space=vmem, size = 0x10000, scoped, tag = 'input window, operand 3, single buffered']
    #allocation3 [shape = 's32[1]{0}', space=sflag, size = 0x4, scoped, tag = 'scoped memory for tpu_custom_call.1']
    #allocation4 [shape = 's32[1]{0}', space=sflag, size = 0x4, scoped, tag = 'scoped memory for tpu_custom_call.1']
    #allocation5 [shape = 'u8[1024]{0}', space=vmem, size = 0x400, scoped, tag = 'output window, operand 0, single buffered']
    %10 = vsyncpa [#allocation3], 0
    %11 = vsyncpa [#allocation4], 0
    // Predicated region
    $region2: #{tpu_custom_call.1} parent=1 // pred_check
      _
    $region3: #{tpu_custom_call.1} parent=1 // pred_check_branch
      %13 = sbr.rel (0) target = $region5
    $region4: #{tpu_custom_call.1} parent=1 // pred_region
      _
    $region5: #{tpu_custom_call.1} parent=1 // pred_fallthru
      _
    // Predicated region
    $region6: #{tpu_custom_call.1} parent=1 // pred_check
      _
    $region7: #{tpu_custom_call.1} parent=1 // pred_check_branch
      %15 = sbr.rel (0) target = $region9
    $region8: #{tpu_custom_call.1} parent=1 // pred_region
      _
    $region9: #{tpu_custom_call.1} parent=1 // pred_fallthru
      _
    // Predicated region
    $region10: #{tpu_custom_call.1} parent=1 // pred_check
      _
    $region11: #{tpu_custom_call.1} parent=1 // pred_check_branch
      %17 = sbr.rel (0) target = $region13
    $region12: #{tpu_custom_call.1} parent=1 // pred_region
      _
    $region13: #{tpu_custom_call.1} parent=1 // pred_fallthru
      _
    // Predicated region
    $region14: #{tpu_custom_call.1} parent=1 // pred_check
      _
    $region15: #{tpu_custom_call.1} parent=1 // pred_check_branch
      %19 = sbr.rel (0) target = $region17
    $region16: #{tpu_custom_call.1} parent=1 // pred_region
      %21 = vsyncadd [#allocation3], 0
      %s22 = sshll.u32 %s3, 4
      %s23 = int_to_ptr.hbm [resolvable:$true] %s22
      %s24 = sshll.u32 [#allocation2], 4
      %s25 = int_to_ptr.vmem [resolvable:$true] %s24
      %30 = dma.hbm_to_vmem [thread:$0]  %s23, 2048, %s25, [#allocation3], 128, 128, 8
    $region17: #{tpu_custom_call.1} parent=1 // pred_fallthru
      _
    // Predicated region
    $region18: #{tpu_custom_call.1} parent=1 // pred_check
      _
    $region19: #{tpu_custom_call.1} parent=1 // pred_check_branch
      %32 = sbr.rel (0) target = $region21
    $region20: #{tpu_custom_call.1} parent=1 // pred_region
      _
    $region21: #{tpu_custom_call.1} parent=1 // pred_fallthru
      _
    // Predicated region
    $region22: #{tpu_custom_call.1} parent=1 // pred_check
      _
    $region23: #{tpu_custom_call.1} parent=1 // pred_check_branch
      %34 = sbr.rel (0) target = $region25
    $region24: #{tpu_custom_call.1} parent=1 // pred_region
      %36 = dma.done [#allocation3], 2048
    $region25: #{tpu_custom_call.1} parent=1 // pred_fallthru
      _
    %v37 = vld [vmem:[%s0] sm:$0xff]
    %v38 = vld [vmem:[%s0 + $0x8] sm:$0xff]
    %v39 = vld [vmem:[%s0 + $0x10] sm:$0xff]
    %v40 = vld [vmem:[%s0 + $0x18] sm:$0xff]
    %v41 = vld [vmem:[%s0 + $0x20] sm:$0xff]
    %v42 = vld [vmem:[%s0 + $0x28] sm:$0xff]
    %v43 = vld [vmem:[%s0 + $0x30] sm:$0xff]
    %v44 = vld [vmem:[%s0 + $0x38] sm:$0xff]
    %v45 = vld [vmem:[%s1] sm:$0xff]
    %v46 = vld [vmem:[%s1 + $0x8] sm:$0x1]
    %v47 = vld [vmem:[%s2] sm:$0x1]
    %v49 = vperm.slane %v47, 0
    %vm51 = vcmask 72704
    %v53 = vsel %vm51, %v37, 0
    %v56 = vsel %vm51, %v38, 0
    %v59 = vsel %vm51, %v39, 0
    %v62 = vsel %vm51, %v40, 0
    %v65 = vsel %vm51, %v41, 0
    %v68 = vsel %vm51, %v42, 0
    %v71 = vsel %vm51, %v43, 0
    %v74 = vsel %vm51, %v44, 0
    %vm76 = vcmask 1040384
    %v78 = vsel %vm76, %v46, 0
    %80 = vmatpush.msra.mxu0 0.0
    %81 = vmatpush.msra.mxu0 0.0
    %82 = vmatpush.msra.mxu0 0.0
    %83 = vmatpush.msra.mxu0 0.0
    %84 = vmatpush.msra.mxu0 0.0
    %85 = vmatpush.msra.mxu0 0.0
    %86 = vmatpush.msra.mxu0 0.0
    %87 = vmatpush.msra.mxu0 0.0
    %88 = vmatpush.msra.mxu0 0.0
    %89 = vmatpush.msra.mxu0 0.0
    %90 = vmatpush.msra.mxu0 0.0
    %91 = vmatpush.msra.mxu0 0.0
    %92 = vmatpush.msra.mxu0 0.0
    %93 = vmatpush.msra.mxu0 0.0
    %94 = vmatpush.msra.mxu0 %v78
    %95 = vmatpush.msra.mxu0 %v45
    %96 = vmatmul.f32.gmra.mxu0 %v53
    %v97 = vpop.f32.mrf.mxu0
    %v98 = vadd.f32 %v49, %v97
    %99 = vmatmul.f32.gmra.mxu0 %v56
    %v100 = vpop.f32.mrf.mxu0
    %v101 = vadd.f32 %v49, %v100
    %102 = vmatmul.f32.gmra.mxu0 %v59
    %v103 = vpop.f32.mrf.mxu0
    %v104 = vadd.f32 %v49, %v103
    %105 = vmatmul.f32.gmra.mxu0 %v62
    %v106 = vpop.f32.mrf.mxu0
    %v107 = vadd.f32 %v49, %v106
    %108 = vmatmul.f32.gmra.mxu0 %v65
    %v109 = vpop.f32.mrf.mxu0
    %v110 = vadd.f32 %v49, %v109
    %111 = vmatmul.f32.gmra.mxu0 %v68
    %v112 = vpop.f32.mrf.mxu0
    %v113 = vadd.f32 %v49, %v112
    %114 = vmatmul.f32.gmra.mxu0 %v71
    %v115 = vpop.f32.mrf.mxu0
    %v116 = vadd.f32 %v49, %v115
    %117 = vmatmul.f32.gmra.mxu0 %v74
    %v118 = vpop.f32.mrf.mxu0
    %v119 = vadd.f32 %v49, %v118
    %120 = vdwg.mxu0
    %v121 = vmax.f32 %v98, 0.0
    %v122 = vmax.f32 %v101, 0.0
    %v123 = vmax.f32 %v104, 0.0
    %v124 = vmax.f32 %v107, 0.0
    %v125 = vmax.f32 %v110, 0.0
    %v126 = vmax.f32 %v113, 0.0
    %v127 = vmax.f32 %v116, 0.0
    %v128 = vmax.f32 %v119, 0.0
    %v129 = vadd.f32 %v121, %v122
    %v130 = vadd.f32 %v129, %v123
    %v131 = vadd.f32 %v130, %v124
    %v132 = vrot.slane %v131, 4
    %v133 = vadd.f32 %v131, %v132
    %v134 = vrot.slane %v133, 2
    %v135 = vadd.f32 %v133, %v134
    %v136 = vrot.slane %v135, 1
    %v137 = vadd.f32 %v135, %v136
    %v138 = vadd.f32 %v125, %v126
    %v139 = vadd.f32 %v138, %v127
    %v140 = vadd.f32 %v139, %v128
    %v141 = vrot.slane %v140, 4
    %v142 = vadd.f32 %v140, %v141
    %v143 = vrot.slane %v142, 2
    %v144 = vadd.f32 %v142, %v143
    %v145 = vrot.slane %v144, 1
    %v146 = vadd.f32 %v144, %v145
    %v147 = vld [vmem:[#allocation2] sm:$0xff]
    %v148 = vld [vmem:[#allocation2 + $0x8] sm:$0xff]
    %v149 = vld [vmem:[#allocation2 + $0x10] sm:$0xff]
    %v150 = vld [vmem:[#allocation2 + $0x18] sm:$0xff]
    %v151 = vld [vmem:[#allocation2 + $0x20] sm:$0xff]
    %v152 = vld [vmem:[#allocation2 + $0x28] sm:$0xff]
    %v153 = vld [vmem:[#allocation2 + $0x30] sm:$0xff]
    %v154 = vld [vmem:[#allocation2 + $0x38] sm:$0xff]
    %v155 = vld [vmem:[#allocation2 + $0x40] sm:$0xff]
    %v156 = vld [vmem:[#allocation2 + $0x48] sm:$0xff]
    %v157 = vld [vmem:[#allocation2 + $0x50] sm:$0xff]
    %v158 = vld [vmem:[#allocation2 + $0x58] sm:$0xff]
    %v159 = vld [vmem:[#allocation2 + $0x60] sm:$0xff]
    %v160 = vld [vmem:[#allocation2 + $0x68] sm:$0xff]
    %v161 = vld [vmem:[#allocation2 + $0x70] sm:$0xff]
    %v162 = vld [vmem:[#allocation2 + $0x78] sm:$0xff]
    %v163 = vld [vmem:[%s4] sm:$0x1]
    %v165 = vperm.slane %v163, 0
    %vm169 = vcmask 1041409
    %v170 = vsel %vm169, %v146, %v137
    %172 = vmatpush.msra.mxu0 %v162
    %173 = vmatpush.msra.mxu0 %v161
    %174 = vmatpush.msra.mxu0 %v160
    %175 = vmatpush.msra.mxu0 %v159
    %176 = vmatpush.msra.mxu0 %v158
    %177 = vmatpush.msra.mxu0 %v157
    %178 = vmatpush.msra.mxu0 %v156
    %179 = vmatpush.msra.mxu0 %v155
    %180 = vmatpush.msra.mxu0 %v154
    %181 = vmatpush.msra.mxu0 %v153
    %182 = vmatpush.msra.mxu0 %v152
    %183 = vmatpush.msra.mxu0 %v151
    %184 = vmatpush.msra.mxu0 %v150
    %185 = vmatpush.msra.mxu0 %v149
    %186 = vmatpush.msra.mxu0 %v148
    %187 = vmatpush.msra.mxu0 %v147
    %188 = vmatmul.f32.gmra.mxu0 %v170
    %v189 = vpop.f32.mrf.mxu0
    %v190 = vadd.f32 %v165, %v189
    %191 = vdwg.mxu0
    %192 = vst [vmem:[#allocation5] sm:$0x3] %v190
    // Predicated region
    $region26: #{tpu_custom_call.1} parent=1 // pred_check
      _
    $region27: #{tpu_custom_call.1} parent=1 // pred_check_branch
      %194 = sbr.rel (0) target = $region29
    $region28: #{tpu_custom_call.1} parent=1 // pred_region
      %196 = vsyncadd [#allocation4], 0
      %s198 = sshll.u32 [#allocation5], 4
      %s199 = int_to_ptr.vmem [resolvable:$true] %s198
      %s200 = sshll.u32 %s5, 4
      %s201 = int_to_ptr.hbm [resolvable:$true] %s200
      %203 = dma.vmem_to_hbm [thread:$0]  %s199, 32, %s201, [#allocation4]
    $region29: #{tpu_custom_call.1} parent=1 // pred_fallthru
      _
    // Predicated region
    $region30: #{tpu_custom_call.1} parent=1 // pred_check
      _
    $region31: #{tpu_custom_call.1} parent=1 // pred_check_branch
      %205 = sbr.rel (0) target = $region33
    $region32: #{tpu_custom_call.1} parent=1 // pred_region
      %207 = dma.done [#allocation4], 32
    $region33: #{tpu_custom_call.1} parent=1 // pred_fallthru
      _
    %208 = vsyncpa [#allocation3], 1
    %209 = vsyncpa [#allocation4], 1

</llo_original>
